<compile_context>
chip_gen: v6e
topology: v6e:2x2x1
jax: 0.10.0
libtpu: 0.0.40
codegen_flags: <defaults>
</compile_context>

<pallas_src>
import functools

import jax
import jax.numpy as jnp
from jax import lax
from jax.experimental import pallas as pl
from jax.experimental.pallas import tpu as pltpu

DROPOUT1 = 0.2
DROPOUT2 = 0.5


def _round_up(n, m):
    return ((n + m - 1) // m) * m


def _pad2(a, rows, cols):
    return jnp.pad(a, ((0, rows - a.shape[0]), (0, cols - a.shape[1])))


def _random_bits(shape, seed_u32, row_offset, salt):
    """Counter-based uint32 bits: fmix32(position ^ seed ^ salt).

    Pure jnp integer ops -> lowers on Mosaic (VPU) and in interpret mode.
    """
    rows = (lax.broadcasted_iota(jnp.int32, shape, 0) + row_offset).astype(jnp.uint32)
    cols = lax.broadcasted_iota(jnp.int32, shape, 1).astype(jnp.uint32)
    x = rows * jnp.uint32(0x01000193) + cols
    x = x ^ (seed_u32 * jnp.uint32(0x9E3779B9))
    x = x + jnp.uint32(salt)
    # murmur3 fmix32 finalizer (bijective, good avalanche)
    x = x ^ (x >> 16)
    x = x * jnp.uint32(0x85EBCA6B)
    x = x ^ (x >> 13)
    x = x * jnp.uint32(0xC2B2AE35)
    x = x ^ (x >> 16)
    return x


def _dropout(h, p, seed_u32, row_offset, salt):
    """Inverted dropout: keep iff bits >= p * 2^32  ->  P(keep) = 1 - p."""
    if p == 0.0:
        return h
    if p == 1.0:
        return jnp.zeros_like(h)
    bits = _random_bits(h.shape, seed_u32, row_offset, salt)
    threshold = jnp.uint32(int(p * (1 << 32)))
    scale = jnp.float32(1.0 / (1.0 - p))
    return jnp.where(bits >= threshold, h * scale, jnp.float32(0.0))


def _mlp_kernel(seed_ref, x_ref, w1_ref, b1_ref, w2_ref, b2_ref, w3_ref, b3_ref,
                o_ref, *, is_training, matmul_dtype, tile_batch):
    if is_training:
        seed_u32 = seed_ref[0].astype(jnp.uint32)
        row_offset = pl.program_id(0) * tile_batch  # global row id -> per-tile streams
    x = x_ref[...].astype(matmul_dtype)

    h1 = jnp.dot(x, w1_ref[...].astype(matmul_dtype),
                 preferred_element_type=jnp.float32) + b1_ref[...]
    h1 = jnp.maximum(h1, 0.0)
    if is_training:
        h1 = _dropout(h1, DROPOUT1, seed_u32, row_offset, salt=0x1234567)

    h2 = jnp.dot(h1.astype(matmul_dtype), w2_ref[...].astype(matmul_dtype),
                 preferred_element_type=jnp.float32) + b2_ref[...]
    h2 = jnp.maximum(h2, 0.0)
    if is_training:
        h2 = _dropout(h2, DROPOUT2, seed_u32, row_offset, salt=0x89ABCDE)

    out = jnp.dot(h2.astype(matmul_dtype), w3_ref[...].astype(matmul_dtype),
                  preferred_element_type=jnp.float32) + b3_ref[...]
    o_ref[...] = out.astype(o_ref.dtype)


def net_forward(x, params, seed, *, is_training=True, use_bf16=True,
                block_batch=256):
    """Fused 3-layer MLP with dropout; batch-tiled single Pallas call."""
    w1, b1, w2, b2, w3, b3 = params
    num_inputs = w1.shape[0]
    num_outputs = w3.shape[1]

    x2d = x.reshape(-1, num_inputs)          # X.reshape(-1, num_inputs)
    batch = x2d.shape[0]

    # lane-dense padded feature dims
    K = _round_up(num_inputs, 128)
    H1 = _round_up(w1.shape[1], 128)
    H2 = _round_up(w2.shape[1], 128)
    NOUT = _round_up(num_outputs, 128)

    # batch tile: biggest <= block_batch that still matches the (8,128) rule
    TB = min(block_batch, _round_up(batch, 8))
    batch_p = _round_up(batch, TB)

    xp = _pad2(x2d, batch_p, K)
    w1p = _pad2(w1, K, H1)
    b1p = _pad2(b1, 1, H1)
    w2p = _pad2(w2, H1, H2)
    b2p = _pad2(b2, 1, H2)
    w3p = _pad2(w3, H2, NOUT)
    b3p = _pad2(b3, 1, NOUT)

    matmul_dtype = jnp.bfloat16 if use_bf16 else jnp.float32
    if use_bf16:
        # halve weight DMA bytes; accumulation stays f32 inside the kernel
        w1p = w1p.astype(jnp.bfloat16)
        w2p = w2p.astype(jnp.bfloat16)
        w3p = w3p.astype(jnp.bfloat16)

    kernel = functools.partial(_mlp_kernel, is_training=is_training,
                               matmul_dtype=matmul_dtype, tile_batch=TB)
    seed_arr = jnp.asarray([seed], dtype=jnp.int32)

    grid = (batch_p // TB,)

    # With num_scalar_prefetch=1 every index_map receives the prefetch ref as a
    # trailing positional arg -> (grid_i, seed_ref).
    def tile_map(i, seed_ref):
        return (i, 0)

    def const_map(i, seed_ref):
        return (0, 0)

    wbytes = 2 if use_bf16 else 4
    flops = 2 * batch_p * (K * H1 + H1 * H2 + H2 * NOUT)
    bytes_accessed = (4 * batch_p * (K + NOUT)
                      + wbytes * (K * H1 + H1 * H2 + H2 * NOUT)
                      + 4 * (H1 + H2 + NOUT))

    out = pl.pallas_call(
        kernel,
        out_shape=jax.ShapeDtypeStruct((batch_p, NOUT), jnp.float32),
        grid_spec=pltpu.PrefetchScalarGridSpec(
            num_scalar_prefetch=1,          # seed lands in SMEM
            grid=grid,
            in_specs=[
                pl.BlockSpec((TB, K), tile_map),        # x: pipelined per tile
                pl.BlockSpec(w1p.shape, const_map),     # weights: VMEM-resident
                pl.BlockSpec(b1p.shape, const_map),
                pl.BlockSpec(w2p.shape, const_map),
                pl.BlockSpec(b2p.shape, const_map),
                pl.BlockSpec(w3p.shape, const_map),
                pl.BlockSpec(b3p.shape, const_map),
            ],
            out_specs=pl.BlockSpec((TB, NOUT), tile_map),
        ),
        compiler_params=pltpu.CompilerParams(
            dimension_semantics=("parallel",),          # shard tiles across TCs
            vmem_limit_bytes=32 * 1024 * 1024,
        ),
        cost_estimate=pl.CostEstimate(
            flops=flops, transcendentals=0, bytes_accessed=bytes_accessed),
    )(seed_arr, xp, w1p, b1p, w2p, b2p, w3p, b3p)

    return out[:batch, :num_outputs]


def init_params(key, num_inputs, num_outputs, num_hiddens1, num_hiddens2):
    k1, k2, k3 = jax.random.split(key, 3)
    s = 0.05
    w1 = s * jax.random.normal(k1, (num_inputs, num_hiddens1), jnp.float32)
    b1 = jnp.zeros((1, num_hiddens1), jnp.float32)
    w2 = s * jax.random.normal(k2, (num_hiddens1, num_hiddens2), jnp.float32)
    b2 = jnp.zeros((1, num_hiddens2), jnp.float32)
    w3 = s * jax.random.normal(k3, (num_hiddens2, num_outputs), jnp.float32)
    b3 = jnp.zeros((1, num_outputs), jnp.float32)
    return (w1, b1, w2, b2, w3, b3)


if __name__ == "__main__":
    key = jax.random.PRNGKey(0)
    kx, kp = jax.random.split(key)

    # small shapes consistent with the module's forward
    batch, num_inputs, num_hiddens1, num_hiddens2, num_outputs = 8, 32, 64, 32, 16

    x = jax.random.normal(kx, (batch, num_inputs), jnp.float32)
    params = init_params(kp, num_inputs, num_outputs, num_hiddens1, num_hiddens2)

    # training mode (dropout active, hash PRNG, bf16 MXU operands)
    out_train = net_forward(x, params, seed=1234, is_training=True, use_bf16=True)
    jax.block_until_ready(out_train)

    # eval mode (no dropout), f32 matmuls — checked against pure-JAX reference
    out_eval_f32 = net_forward(x, params, seed=0, is_training=False, use_bf16=False)
    jax.block_until_ready(out_eval_f32)

    # eval mode, bf16 matmuls — looser tolerance
    out_eval_bf16 = net_forward(x, params, seed=0, is_training=False, use_bf16=True)
    jax.block_until_ready(out_eval_bf16)

    w1, b1, w2, b2, w3, b3 = params
    hp = jax.lax.Precision.HIGHEST
    h1 = jnp.maximum(jnp.dot(x, w1, precision=hp) + b1, 0.0)
    h2 = jnp.maximum(jnp.dot(h1, w2, precision=hp) + b2, 0.0)
    ref = jnp.dot(h2, w3, precision=hp) + b3

    assert out_train.shape == (batch, num_outputs)
    assert bool(jnp.all(jnp.isfinite(out_train)))
    assert jnp.allclose(out_eval_f32, ref, atol=5e-3, rtol=5e-3)
    assert jnp.allclose(out_eval_bf16, ref, atol=3e-2, rtol=3e-2)

    print("KERNEL_OK")
</pallas_src>

<mosaic_0001>
module attributes {stable_mosaic.version = 11 : i64} {
  func.func @_mlp_kernel(%arg0: i32, %arg1: memref<1xi32, #tpu.memory_space<smem>>, %arg2: memref<8x128xf32, #tpu.memory_space<vmem>>, %arg3: memref<128x128xbf16, #tpu.memory_space<vmem>>, %arg4: memref<1x128xf32, #tpu.memory_space<vmem>>, %arg5: memref<128x128xbf16, #tpu.memory_space<vmem>>, %arg6: memref<1x128xf32, #tpu.memory_space<vmem>>, %arg7: memref<128x128xbf16, #tpu.memory_space<vmem>>, %arg8: memref<1x128xf32, #tpu.memory_space<vmem>>, %arg9: memref<8x128xf32, #tpu.memory_space<vmem>>) attributes {dimension_semantics = [#tpu.dimension_semantics<parallel>], iteration_bounds = array<i64: 1>, scalar_prefetch = 1 : i64, scratch_operands = 0 : i64, tpu.core_type = #tpu.core_type<tc>, window_params = [{transform_indices = @transform_0, window_bounds = array<i64: 8, 128>}, {pipeline_mode = #tpu.pipeline_mode<synchronous>, transform_indices = @transform_1, window_bounds = array<i64: 128, 128>}, {pipeline_mode = #tpu.pipeline_mode<synchronous>, transform_indices = @transform_2, window_bounds = array<i64: 1, 128>}, {pipeline_mode = #tpu.pipeline_mode<synchronous>, transform_indices = @transform_3, window_bounds = array<i64: 128, 128>}, {pipeline_mode = #tpu.pipeline_mode<synchronous>, transform_indices = @transform_4, window_bounds = array<i64: 1, 128>}, {pipeline_mode = #tpu.pipeline_mode<synchronous>, transform_indices = @transform_5, window_bounds = array<i64: 128, 128>}, {pipeline_mode = #tpu.pipeline_mode<synchronous>, transform_indices = @transform_6, window_bounds = array<i64: 1, 128>}, {transform_indices = @transform_7, window_bounds = array<i64: 8, 128>}]} {
    %c0 = arith.constant 0 : index
    %0 = memref.load %arg1[%c0] : memref<1xi32, #tpu.memory_space<smem>>
    %c8_i32 = arith.constant 8 : i32
    %1 = arith.muli %arg0, %c8_i32 : i32
    %c0_0 = arith.constant 0 : index
    %c0_1 = arith.constant 0 : index
    %2 = vector.load %arg2[%c0_0, %c0_1] : memref<8x128xf32, #tpu.memory_space<vmem>>, vector<8x128xf32>
    %3 = arith.truncf %2 : vector<8x128xf32> to vector<8x128xbf16>
    %c0_2 = arith.constant 0 : index
    %c0_3 = arith.constant 0 : index
    %4 = vector.load %arg3[%c0_2, %c0_3] : memref<128x128xbf16, #tpu.memory_space<vmem>>, vector<128x128xbf16>
    %cst = arith.constant dense<0.000000e+00> : vector<8x128xf32>
    %5 = tpu.matmul %3, %4, %cst {dimension_numbers = #tpu.dot_dimension_numbers<[1], [0], [0], [1], [0, 0, 1, 1], [], []>} : vector<8x128xbf16>, vector<128x128xbf16>, vector<8x128xf32> -> vector<8x128xf32>
    %c0_4 = arith.constant 0 : index
    %c0_5 = arith.constant 0 : index
    %6 = vector.load %arg4[%c0_4, %c0_5] : memref<1x128xf32, #tpu.memory_space<vmem>>, vector<1x128xf32>
    %7 = vector.broadcast %6 : vector<1x128xf32> to vector<8x128xf32>
    %8 = arith.addf %5, %7 : vector<8x128xf32>
    %cst_6 = arith.constant 0.000000e+00 : f32
    %9 = vector.broadcast %cst_6 : f32 to vector<8x128xf32>
    %10 = arith.maximumf %8, %9 : vector<8x128xf32>
    %11 = tpu.iota {dimensions = array<i32: 0>} : vector<8x128xi32>
    %12 = vector.broadcast %1 : i32 to vector<8x128xi32>
    %13 = arith.addi %11, %12 : vector<8x128xi32>
    %14 = tpu.iota {dimensions = array<i32: 1>} : vector<8x128xi32>
    %c16777619_i32 = arith.constant 16777619 : i32
    %15 = vector.broadcast %c16777619_i32 : i32 to vector<8x128xi32>
    %16 = arith.muli %13, %15 : vector<8x128xi32>
    %17 = arith.addi %16, %14 : vector<8x128xi32>
    %c-1640531527_i32 = arith.constant -1640531527 : i32
    %18 = arith.muli %0, %c-1640531527_i32 : i32
    %19 = vector.broadcast %18 : i32 to vector<8x128xi32>
    %20 = arith.xori %17, %19 : vector<8x128xi32>
    %c19088743_i32 = arith.constant 19088743 : i32
    %21 = vector.broadcast %c19088743_i32 : i32 to vector<8x128xi32>
    %22 = arith.addi %20, %21 : vector<8x128xi32>
    %c16_i32 = arith.constant 16 : i32
    %23 = vector.broadcast %c16_i32 : i32 to vector<8x128xi32>
    %24 = arith.shrui %22, %23 : vector<8x128xi32>
    %25 = arith.xori %22, %24 : vector<8x128xi32>
    %c-2048144789_i32 = arith.constant -2048144789 : i32
    %26 = vector.broadcast %c-2048144789_i32 : i32 to vector<8x128xi32>
    %27 = arith.muli %25, %26 : vector<8x128xi32>
    %c13_i32 = arith.constant 13 : i32
    %28 = vector.broadcast %c13_i32 : i32 to vector<8x128xi32>
    %29 = arith.shrui %27, %28 : vector<8x128xi32>
    %30 = arith.xori %27, %29 : vector<8x128xi32>
    %c-1028477387_i32 = arith.constant -1028477387 : i32
    %31 = vector.broadcast %c-1028477387_i32 : i32 to vector<8x128xi32>
    %32 = arith.muli %30, %31 : vector<8x128xi32>
    %c16_i32_7 = arith.constant 16 : i32
    %33 = vector.broadcast %c16_i32_7 : i32 to vector<8x128xi32>
    %34 = arith.shrui %32, %33 : vector<8x128xi32>
    %35 = arith.xori %32, %34 : vector<8x128xi32>
    %c858993459_i32 = arith.constant 858993459 : i32
    %36 = vector.broadcast %c858993459_i32 : i32 to vector<8x128xi32>
    %37 = arith.cmpi uge, %35, %36 : vector<8x128xi32>
    %cst_8 = arith.constant 1.250000e+00 : f32
    %38 = vector.broadcast %cst_8 : f32 to vector<8x128xf32>
    %39 = arith.mulf %10, %38 : vector<8x128xf32>
    %cst_9 = arith.constant 0.000000e+00 : f32
    %40 = vector.broadcast %cst_9 : f32 to vector<8x128xf32>
    %41 = arith.select %37, %39, %40 : vector<8x128xi1>, vector<8x128xf32>
    %42 = arith.truncf %41 : vector<8x128xf32> to vector<8x128xbf16>
    %c0_10 = arith.constant 0 : index
    %c0_11 = arith.constant 0 : index
    %43 = vector.load %arg5[%c0_10, %c0_11] : memref<128x128xbf16, #tpu.memory_space<vmem>>, vector<128x128xbf16>
    %cst_12 = arith.constant dense<0.000000e+00> : vector<8x128xf32>
    %44 = tpu.matmul %42, %43, %cst_12 {dimension_numbers = #tpu.dot_dimension_numbers<[1], [0], [0], [1], [0, 0, 1, 1], [], []>} : vector<8x128xbf16>, vector<128x128xbf16>, vector<8x128xf32> -> vector<8x128xf32>
    %c0_13 = arith.constant 0 : index
    %c0_14 = arith.constant 0 : index
    %45 = vector.load %arg6[%c0_13, %c0_14] : memref<1x128xf32, #tpu.memory_space<vmem>>, vector<1x128xf32>
    %46 = vector.broadcast %45 : vector<1x128xf32> to vector<8x128xf32>
    %47 = arith.addf %44, %46 : vector<8x128xf32>
    %cst_15 = arith.constant 0.000000e+00 : f32
    %48 = vector.broadcast %cst_15 : f32 to vector<8x128xf32>
    %49 = arith.maximumf %47, %48 : vector<8x128xf32>
    %50 = tpu.iota {dimensions = array<i32: 0>} : vector<8x128xi32>
    %51 = vector.broadcast %1 : i32 to vector<8x128xi32>
    %52 = arith.addi %50, %51 : vector<8x128xi32>
    %53 = tpu.iota {dimensions = array<i32: 1>} : vector<8x128xi32>
    %c16777619_i32_16 = arith.constant 16777619 : i32
    %54 = vector.broadcast %c16777619_i32_16 : i32 to vector<8x128xi32>
    %55 = arith.muli %52, %54 : vector<8x128xi32>
    %56 = arith.addi %55, %53 : vector<8x128xi32>
    %c-1640531527_i32_17 = arith.constant -1640531527 : i32
    %57 = arith.muli %0, %c-1640531527_i32_17 : i32
    %58 = vector.broadcast %57 : i32 to vector<8x128xi32>
    %59 = arith.xori %56, %58 : vector<8x128xi32>
    %c144358622_i32 = arith.constant 144358622 : i32
    %60 = vector.broadcast %c144358622_i32 : i32 to vector<8x128xi32>
    %61 = arith.addi %59, %60 : vector<8x128xi32>
    %c16_i32_18 = arith.constant 16 : i32
    %62 = vector.broadcast %c16_i32_18 : i32 to vector<8x128xi32>
    %63 = arith.shrui %61, %62 : vector<8x128xi32>
    %64 = arith.xori %61, %63 : vector<8x128xi32>
    %c-2048144789_i32_19 = arith.constant -2048144789 : i32
    %65 = vector.broadcast %c-2048144789_i32_19 : i32 to vector<8x128xi32>
    %66 = arith.muli %64, %65 : vector<8x128xi32>
    %c13_i32_20 = arith.constant 13 : i32
    %67 = vector.broadcast %c13_i32_20 : i32 to vector<8x128xi32>
    %68 = arith.shrui %66, %67 : vector<8x128xi32>
    %69 = arith.xori %66, %68 : vector<8x128xi32>
    %c-1028477387_i32_21 = arith.constant -1028477387 : i32
    %70 = vector.broadcast %c-1028477387_i32_21 : i32 to vector<8x128xi32>
    %71 = arith.muli %69, %70 : vector<8x128xi32>
    %c16_i32_22 = arith.constant 16 : i32
    %72 = vector.broadcast %c16_i32_22 : i32 to vector<8x128xi32>
    %73 = arith.shrui %71, %72 : vector<8x128xi32>
    %74 = arith.xori %71, %73 : vector<8x128xi32>
    %c-2147483648_i32 = arith.constant -2147483648 : i32
    %75 = vector.broadcast %c-2147483648_i32 : i32 to vector<8x128xi32>
    %76 = arith.cmpi uge, %74, %75 : vector<8x128xi32>
    %cst_23 = arith.constant 2.000000e+00 : f32
    %77 = vector.broadcast %cst_23 : f32 to vector<8x128xf32>
    %78 = arith.mulf %49, %77 : vector<8x128xf32>
    %cst_24 = arith.constant 0.000000e+00 : f32
    %79 = vector.broadcast %cst_24 : f32 to vector<8x128xf32>
    %80 = arith.select %76, %78, %79 : vector<8x128xi1>, vector<8x128xf32>
    %81 = arith.truncf %80 : vector<8x128xf32> to vector<8x128xbf16>
    %c0_25 = arith.constant 0 : index
    %c0_26 = arith.constant 0 : index
    %82 = vector.load %arg7[%c0_25, %c0_26] : memref<128x128xbf16, #tpu.memory_space<vmem>>, vector<128x128xbf16>
    %cst_27 = arith.constant dense<0.000000e+00> : vector<8x128xf32>
    %83 = tpu.matmul %81, %82, %cst_27 {dimension_numbers = #tpu.dot_dimension_numbers<[1], [0], [0], [1], [0, 0, 1, 1], [], []>} : vector<8x128xbf16>, vector<128x128xbf16>, vector<8x128xf32> -> vector<8x128xf32>
    %c0_28 = arith.constant 0 : index
    %c0_29 = arith.constant 0 : index
    %84 = vector.load %arg8[%c0_28, %c0_29] : memref<1x128xf32, #tpu.memory_space<vmem>>, vector<1x128xf32>
    %85 = vector.broadcast %84 : vector<1x128xf32> to vector<8x128xf32>
    %86 = arith.addf %83, %85 : vector<8x128xf32>
    %c0_30 = arith.constant 0 : index
    %c0_31 = arith.constant 0 : index
    %87 = vector.load %arg9[%c0_30, %c0_31] : memref<8x128xf32, #tpu.memory_space<vmem>>, vector<8x128xf32>
    tpu.vector_store %arg9[%c0_30, %c0_31], %86 {strides = array<i32>} : memref<8x128xf32, #tpu.memory_space<vmem>>, vector<8x128xf32>,
    return
  }
  func.func @transform_0(%arg0: i32, %arg1: memref<1xi32, #tpu.memory_space<smem>>) -> (i32, i32) {
    %c0_i32 = arith.constant 0 : i32
    %c0_i32_0 = arith.constant 0 : i32
    return %arg0, %c0_i32 : i32, i32
  }
  func.func @transform_1(%arg0: i32, %arg1: memref<1xi32, #tpu.memory_space<smem>>) -> (i32, i32) {
    %c0_i32 = arith.constant 0 : i32
    %c0_i32_0 = arith.constant 0 : i32
    %c0_i32_1 = arith.constant 0 : i32
    return %c0_i32, %c0_i32_0 : i32, i32
  }
  func.func @transform_2(%arg0: i32, %arg1: memref<1xi32, #tpu.memory_space<smem>>) -> (i32, i32) {
    %c0_i32 = arith.constant 0 : i32
    %c0_i32_0 = arith.constant 0 : i32
    %c0_i32_1 = arith.constant 0 : i32
    return %c0_i32, %c0_i32_0 : i32, i32
  }
  func.func @transform_3(%arg0: i32, %arg1: memref<1xi32, #tpu.memory_space<smem>>) -> (i32, i32) {
    %c0_i32 = arith.constant 0 : i32
    %c0_i32_0 = arith.constant 0 : i32
    %c0_i32_1 = arith.constant 0 : i32
    return %c0_i32, %c0_i32_0 : i32, i32
  }
  func.func @transform_4(%arg0: i32, %arg1: memref<1xi32, #tpu.memory_space<smem>>) -> (i32, i32) {
    %c0_i32 = arith.constant 0 : i32
    %c0_i32_0 = arith.constant 0 : i32
    %c0_i32_1 = arith.constant 0 : i32
    return %c0_i32, %c0_i32_0 : i32, i32
  }
  func.func @transform_5(%arg0: i32, %arg1: memref<1xi32, #tpu.memory_space<smem>>) -> (i32, i32) {
    %c0_i32 = arith.constant 0 : i32
    %c0_i32_0 = arith.constant 0 : i32
    %c0_i32_1 = arith.constant 0 : i32
    return %c0_i32, %c0_i32_0 : i32, i32
  }
  func.func @transform_6(%arg0: i32, %arg1: memref<1xi32, #tpu.memory_space<smem>>) -> (i32, i32) {
    %c0_i32 = arith.constant 0 : i32
    %c0_i32_0 = arith.constant 0 : i32
    %c0_i32_1 = arith.constant 0 : i32
    return %c0_i32, %c0_i32_0 : i32, i32
  }
  func.func @transform_7(%arg0: i32, %arg1: memref<1xi32, #tpu.memory_space<smem>>) -> (i32, i32) {
    %c0_i32 = arith.constant 0 : i32
    %c0_i32_0 = arith.constant 0 : i32
    return %arg0, %c0_i32 : i32, i32
  }
}

</mosaic_0001>

<llo_original>
// kernel: tpu_custom_call.1
$region0: #{tpu_custom_call.1}
  #allocation0 [shape = 'u32[]', space=smem, size = 0x4, offset = 0x4, fixed_abs, tag = 'smem constant byte address 0x4 - core index']
  #allocation1 [shape = 'u32[144,128]{1,0:T(1,128)}', space=vmem, size = 0x12000, scoped, tag = 'internal scratch']
  #allocation2 [shape = 's32[1]{0}', space=sflag, size = 0x4, scoped, tag = 'scoped memory for tpu_custom_call.1']
  #allocation3 [shape = 's32[1]{0:T(128)S(6)}', space=smem, size = 0x200, scoped, tag = 'prefetched SMEM operand 0']
  %s0 = inlined_call_operand.<no memory space> [shape: s32[1], index: 0, kind: input, shape index: {}]
  %s1 = inlined_call_operand.hbm [shape: f32[8,128], index: 1, kind: input, shape index: {}]
  %s2 = inlined_call_operand.hbm [shape: bf16[128,128], index: 2, kind: input, shape index: {}]
  %s3 = inlined_call_operand.vmem [shape: f32[1,128], index: 3, kind: input, shape index: {}]
  %s4 = inlined_call_operand.hbm [shape: bf16[128,128], index: 4, kind: input, shape index: {}]
  %s5 = inlined_call_operand.vmem [shape: f32[1,128], index: 5, kind: input, shape index: {}]
  %s6 = inlined_call_operand.hbm [shape: bf16[128,128], index: 6, kind: input, shape index: {}]
  %s7 = inlined_call_operand.vmem [shape: f32[1,128], index: 7, kind: input, shape index: {}]
  %s8 = inlined_call_operand.hbm [shape: f32[8,128], index: 8, kind: output, shape index: {}]
  %s9 = sld [smem:[#allocation0]]
  $region54: #{tpu_custom_call.1} parent=0
    _
  %s11 = ssub.s32 1, %s9
  %s12 = scalar_select 0, %s11, %s9
  %13 = sst [smem:[#allocation3]] %s0
  $region1: #{tpu_custom_call.1} parent=0
    #allocation4 [shape = 'u8[4096]{0}', space=vmem, size = 0x1000, scoped, tag = 'input window, operand 1, single buffered']
    #allocation5 [shape = 's32[1]{0}', space=sflag, size = 0x4, scoped, tag = 'scoped memory for tpu_custom_call.1']
    #allocation6 [shape = 's32[1]{0}', space=sflag, size = 0x4, scoped, tag = 'scoped memory for tpu_custom_call.1']
    #allocation7 [shape = 'u8[32768]{0}', space=vmem, size = 0x8000, scoped, tag = 'input window, operand 2, single buffered']
    #allocation8 [shape = 's32[1]{0}', space=sflag, size = 0x4, scoped, tag = 'scoped memory for tpu_custom_call.1']
    #allocation9 [shape = 'u8[32768]{0}', space=vmem, size = 0x8000, scoped, tag = 'input window, operand 4, single buffered']
    #allocation10 [shape = 'u8[32768]{0}', space=vmem, size = 0x8000, scoped, tag = 'input window, operand 6, single buffered']
    #allocation11 [shape = 's32[1]{0}', space=sflag, size = 0x4, scoped, tag = 'scoped memory for tpu_custom_call.1']
    #allocation12 [shape = 'u8[4096]{0}', space=vmem, size = 0x1000, scoped, tag = 'output window, operand 0, single buffered']
    %14 = vsyncpa [#allocation5], 0
    %15 = vsyncpa [#allocation8], 0
    %16 = vsyncpa [#allocation11], 0
    %17 = vsyncpa [#allocation6], 0
    // Predicated region
    $region2: #{tpu_custom_call.1} parent=1 // pred_check
      _
    $region3: #{tpu_custom_call.1} parent=1 // pred_check_branch
      %19 = sbr.rel (0) target = $region5
    $region4: #{tpu_custom_call.1} parent=1 // pred_region
      %s21 = ssub.s32 128, 128
      %22 = vsyncadd [#allocation5], %s21
      %s24 = sshll.u32 [#allocation4], 4
      %s25 = int_to_ptr.vmem [resolvable:$true] %s24
      %27 = dma.hbm_to_vmem [thread:$0]  %s1, 128, %s25, [#allocation5]
    $region5: #{tpu_custom_call.1} parent=1 // pred_fallthru
      _
    // Predicated region
    $region6: #{tpu_custom_call.1} parent=1 // pred_check
      _
    $region7: #{tpu_custom_call.1} parent=1 // pred_check_branch
      %29 = sbr.rel (0) target = $region9
    $region8: #{tpu_custom_call.1} parent=1 // pred_region
      %s31 = ssub.s32 1024, 1024
      %32 = vsyncadd [#allocation8], %s31
      %s33 = sshll.u32 [#allocation7], 4
      %s34 = int_to_ptr.vmem [resolvable:$true] %s33
      %39 = dma.hbm_to_vmem [thread:$0]  %s2, 1024, %s34, [#allocation8], 64, 64, 4
    $region9: #{tpu_custom_call.1} parent=1 // pred_fallthru
      _
    // Predicated region
    $region10: #{tpu_custom_call.1} parent=1 // pred_check
      _
    $region11: #{tpu_custom_call.1} parent=1 // pred_check_branch
      %41 = sbr.rel (0) target = $region13
    $region12: #{tpu_custom_call.1} parent=1 // pred_region
      _
    $region13: #{tpu_custom_call.1} parent=1 // pred_fallthru
      _
    // Predicated region
    $region14: #{tpu_custom_call.1} parent=1 // pred_check
      _
    $region15: #{tpu_custom_call.1} parent=1 // pred_check_branch
      %43 = sbr.rel (0) target = $region17
    $region16: #{tpu_custom_call.1} parent=1 // pred_region
      %s45 = ssub.s32 1024, 1024
      %46 = vsyncadd [#allocation8], %s45
      %s47 = sshll.u32 [#allocation9], 4
      %s48 = int_to_ptr.vmem [resolvable:$true] %s47
      %53 = dma.hbm_to_vmem [thread:$0]  %s4, 1024, %s48, [#allocation8], 64, 64, 4
    $region17: #{tpu_custom_call.1} parent=1 // pred_fallthru
      _
    // Predicated region
    $region18: #{tpu_custom_call.1} parent=1 // pred_check
      _
    $region19: #{tpu_custom_call.1} parent=1 // pred_check_branch
      %55 = sbr.rel (0) target = $region21
    $region20: #{tpu_custom_call.1} parent=1 // pred_region
      _
    $region21: #{tpu_custom_call.1} parent=1 // pred_fallthru
      _
    // Predicated region
    $region22: #{tpu_custom_call.1} parent=1 // pred_check
      _
    $region23: #{tpu_custom_call.1} parent=1 // pred_check_branch
      %57 = sbr.rel (0) target = $region25
    $region24: #{tpu_custom_call.1} parent=1 // pred_region
      %s59 = ssub.s32 1024, 1024
      %60 = vsyncadd [#allocation11], %s59
      %s61 = sshll.u32 [#allocation10], 4
      %s62 = int_to_ptr.vmem [resolvable:$true] %s61
      %67 = dma.hbm_to_vmem [thread:$0]  %s6, 1024, %s62, [#allocation11], 64, 64, 4
    $region25: #{tpu_custom_call.1} parent=1 // pred_fallthru
      _
    // Predicated region
    $region26: #{tpu_custom_call.1} parent=1 // pred_check
      _
    $region27: #{tpu_custom_call.1} parent=1 // pred_check_branch
      %69 = sbr.rel (0) target = $region29
    $region28: #{tpu_custom_call.1} parent=1 // pred_region
      _
    $region29: #{tpu_custom_call.1} parent=1 // pred_fallthru
      _
    // Predicated region
    $region30: #{tpu_custom_call.1} parent=1 // pred_check
      _
    $region31: #{tpu_custom_call.1} parent=1 // pred_check_branch
      %71 = sbr.rel (0) target = $region33
    $region32: #{tpu_custom_call.1} parent=1 // pred_region
      %72 = dma.done [#allocation5], 128
    $region33: #{tpu_custom_call.1} parent=1 // pred_fallthru
      _
    // Predicated region
    $region34: #{tpu_custom_call.1} parent=1 // pred_check
      _
    $region35: #{tpu_custom_call.1} parent=1 // pred_check_branch
      %74 = sbr.rel (0) target = $region37
    $region36: #{tpu_custom_call.1} parent=1 // pred_region
      %75 = dma.done [#allocation8], 1024
    $region37: #{tpu_custom_call.1} parent=1 // pred_fallthru
      _
    // Predicated region
    $region38: #{tpu_custom_call.1} parent=1 // pred_check
      _
    $region39: #{tpu_custom_call.1} parent=1 // pred_check_branch
      %77 = sbr.rel (0) target = $region41
    $region40: #{tpu_custom_call.1} parent=1 // pred_region
      %78 = dma.done [#allocation8], 1024
    $region41: #{tpu_custom_call.1} parent=1 // pred_fallthru
      _
    // Predicated region
    $region42: #{tpu_custom_call.1} parent=1 // pred_check
      _
    $region43: #{tpu_custom_call.1} parent=1 // pred_check_branch
      %80 = sbr.rel (0) target = $region45
    $region44: #{tpu_custom_call.1} parent=1 // pred_region
      %81 = dma.done [#allocation11], 1024
    $region45: #{tpu_custom_call.1} parent=1 // pred_fallthru
      _
    %s83 = sld [smem:[#allocation3]]
    %s84 = smul.u32 0, 8
    %v85 = vld [vmem:[#allocation4] sm:$0xff]
    %v86 = vpack.c.bf16 %v85, %v85
    %v87 = vld [vmem:[#allocation7] sm:$0xf]
    %v88 = vld [vmem:[#allocation7 + $0x4] sm:$0xf]
    %v89 = vld [vmem:[#allocation7 + $0x8] sm:$0xf]
    %v90 = vld [vmem:[#allocation7 + $0xc] sm:$0xf]
    %v91 = vld [vmem:[#allocation7 + $0x10] sm:$0xf]
    %v92 = vld [vmem:[#allocation7 + $0x14] sm:$0xf]
    %v93 = vld [vmem:[#allocation7 + $0x18] sm:$0xf]
    %v94 = vld [vmem:[#allocation7 + $0x1c] sm:$0xf]
    %v95 = vld [vmem:[#allocation7 + $0x20] sm:$0xf]
    %v96 = vld [vmem:[#allocation7 + $0x24] sm:$0xf]
    %v97 = vld [vmem:[#allocation7 + $0x28] sm:$0xf]
    %v98 = vld [vmem:[#allocation7 + $0x2c] sm:$0xf]
    %v99 = vld [vmem:[#allocation7 + $0x30] sm:$0xf]
    %v100 = vld [vmem:[#allocation7 + $0x34] sm:$0xf]
    %v101 = vld [vmem:[#allocation7 + $0x38] sm:$0xf]
    %v102 = vld [vmem:[#allocation7 + $0x3c] sm:$0xf]
    %v103 = vld [vmem:[%s3] sm:$0x1]
    %v105 = vlaneseq
    %v106 = vshrl.u32 %v105, 7
    %v107 = vsub.s32 0, %v106
    %v108 = vrot.slane %v103, %v107
    %v126 = vunpack.c.l.b16 %v87
    %v127 = vunpack.c.l.b16 %v88
    %v128 = vunpack.c.l.b16 %v89
    %v129 = vunpack.c.l.b16 %v90
    %v130 = vunpack.c.l.b16 %v91
    %v131 = vunpack.c.l.b16 %v92
    %v132 = vunpack.c.l.b16 %v93
    %v133 = vunpack.c.l.b16 %v94
    %v134 = vunpack.c.l.b16 %v95
    %v135 = vunpack.c.l.b16 %v96
    %v136 = vunpack.c.l.b16 %v97
    %v137 = vunpack.c.l.b16 %v98
    %v138 = vunpack.c.l.b16 %v99
    %v139 = vunpack.c.l.b16 %v100
    %v140 = vunpack.c.l.b16 %v101
    %v141 = vunpack.c.l.b16 %v102
    %v142 = vpack.c.b16 %v127, %v126
    %v143 = vpack.c.b16 %v129, %v128
    %v144 = vpack.c.b16 %v131, %v130
    %v145 = vpack.c.b16 %v133, %v132
    %v146 = vpack.c.b16 %v135, %v134
    %v147 = vpack.c.b16 %v137, %v136
    %v148 = vpack.c.b16 %v139, %v138
    %v149 = vpack.c.b16 %v141, %v140
    %158 = vmatprep.subr.bf16.mxu0 0
    %159 = vmatpush1.bf16.msra.mxu0 %v149
    %160 = vmatprep.subr.bf16.mxu0 0
    %161 = vmatpush1.bf16.msra.mxu0 %v148
    %162 = vmatprep.subr.bf16.mxu0 0
    %163 = vmatpush1.bf16.msra.mxu0 %v147
    %164 = vmatprep.subr.bf16.mxu0 0
    %165 = vmatpush1.bf16.msra.mxu0 %v146
    %166 = vmatprep.subr.bf16.mxu0 0
    %167 = vmatpush1.bf16.msra.mxu0 %v145
    %168 = vmatprep.subr.bf16.mxu0 0
    %169 = vmatpush1.bf16.msra.mxu0 %v144
    %170 = vmatprep.subr.bf16.mxu0 0
    %171 = vmatpush1.bf16.msra.mxu0 %v143
    %172 = vmatprep.subr.bf16.mxu0 0
    %173 = vmatpush1.bf16.msra.mxu0 %v142
    %174 = vmatprep.subr.bf16.mxu0 0
    %175 = vmatpush2.bf16.msra.mxu0 0
    %176 = vmatprep.subr.bf16.mxu0 0
    %177 = vmatpush2.bf16.msra.mxu0 0
    %178 = vmatprep.subr.bf16.mxu0 0
    %179 = vmatpush2.bf16.msra.mxu0 0
    %180 = vmatprep.subr.bf16.mxu0 0
    %181 = vmatpush2.bf16.msra.mxu0 0
    %182 = vmatprep.subr.bf16.mxu0 0
    %183 = vmatpush2.bf16.msra.mxu0 0
    %184 = vmatprep.subr.bf16.mxu0 0
    %185 = vmatpush2.bf16.msra.mxu0 0
    %186 = vmatprep.subr.bf16.mxu0 0
    %187 = vmatpush2.bf16.msra.mxu0 0
    %188 = vmatprep.subr.bf16.mxu0 0
    %189 = vmatpush2.bf16.msra.mxu0 0
    %190 = vmatprep.mubr.bf16.mxu0 0
    %191 = vmatmul.mubr.bf16.gmra.mxu0 %v86
    %v192 = vpop.f32.mrf.mxu0
    %v193 = vadd.f32 %v108, %v192
    %v194 = vpop.f32.mrf.mxu0
    %v195 = vpop.f32.mrf.mxu0
    %v196 = vpop.f32.mrf.mxu0
    %197 = vdwg.mxu0
    %v198 = vmax.f32 %v193, 0.0
    %v199 = vlaneseq
    %v200 = vshrl.u32 %v199, 7
    %v201 = vstv %s84
    %v202 = vadd.s32 %v200, %v201
    %v203 = vlaneseq
    %v204 = vand.u32 %v203, 127
    %v205 = vmul.u32 %v202, 16777619
    %v206 = vadd.s32 %v205, %v204
    %s207 = smul.u32 %s83, 2654435769
    %v208 = vstv %s207
    %v209 = vxor.u32 %v206, %v208
    %v210 = vadd.s32 %v209, 19088743
    %v211 = vshrl.u32 %v210, 16
    %v212 = vxor.u32 %v210, %v211
    %v213 = vmul.u32 %v212, 2246822507
    %v214 = vshrl.u32 %v213, 13
    %v215 = vxor.u32 %v213, %v214
    %v216 = vmul.u32 %v215, 3266489909
    %v217 = vshrl.u32 %v216, 16
    %v218 = vxor.u32 %v216, %v217
    %vm219 = vcmp.ge.u32.totalorder %v218, 858993459
    %v220 = vmul.f32 %v198, 1.25
    %v221 = vsel %vm219, %v220, 0.0
    %v222 = vpack.c.bf16 %v221, %v221
    %v223 = vld [vmem:[#allocation9] sm:$0xf]
    %v224 = vld [vmem:[#allocation9 + $0x4] sm:$0xf]
    %v225 = vld [vmem:[#allocation9 + $0x8] sm:$0xf]
    %v226 = vld [vmem:[#allocation9 + $0xc] sm:$0xf]
    %v227 = vld [vmem:[#allocation9 + $0x10] sm:$0xf]
    %v228 = vld [vmem:[#allocation9 + $0x14] sm:$0xf]
    %v229 = vld [vmem:[#allocation9 + $0x18] sm:$0xf]
    %v230 = vld [vmem:[#allocation9 + $0x1c] sm:$0xf]
    %v231 = vld [vmem:[#allocation9 + $0x20] sm:$0xf]
    %v232 = vld [vmem:[#allocation9 + $0x24] sm:$0xf]
    %v233 = vld [vmem:[#allocation9 + $0x28] sm:$0xf]
    %v234 = vld [vmem:[#allocation9 + $0x2c] sm:$0xf]
    %v235 = vld [vmem:[#allocation9 + $0x30] sm:$0xf]
    %v236 = vld [vmem:[#allocation9 + $0x34] sm:$0xf]
    %v237 = vld [vmem:[#allocation9 + $0x38] sm:$0xf]
    %v238 = vld [vmem:[#allocation9 + $0x3c] sm:$0xf]
    %v239 = vld [vmem:[%s5] sm:$0x1]
    %v241 = vlaneseq
    %v242 = vshrl.u32 %v241, 7
    %v243 = vsub.s32 0, %v242
    %v244 = vrot.slane %v239, %v243
    %v262 = vunpack.c.l.b16 %v223
    %v263 = vunpack.c.l.b16 %v224
    %v264 = vunpack.c.l.b16 %v225
    %v265 = vunpack.c.l.b16 %v226
    %v266 = vunpack.c.l.b16 %v227
    %v267 = vunpack.c.l.b16 %v228
    %v268 = vunpack.c.l.b16 %v229
    %v269 = vunpack.c.l.b16 %v230
    %v270 = vunpack.c.l.b16 %v231
    %v271 = vunpack.c.l.b16 %v232
    %v272 = vunpack.c.l.b16 %v233
    %v273 = vunpack.c.l.b16 %v234
    %v274 = vunpack.c.l.b16 %v235
    %v275 = vunpack.c.l.b16 %v236
    %v276 = vunpack.c.l.b16 %v237
    %v277 = vunpack.c.l.b16 %v238
    %v278 = vpack.c.b16 %v263, %v262
    %v279 = vpack.c.b16 %v265, %v264
    %v280 = vpack.c.b16 %v267, %v266
    %v281 = vpack.c.b16 %v269, %v268
    %v282 = vpack.c.b16 %v271, %v270
    %v283 = vpack.c.b16 %v273, %v272
    %v284 = vpack.c.b16 %v275, %v274
    %v285 = vpack.c.b16 %v277, %v276
    %294 = vmatprep.subr.bf16.mxu0 0
    %295 = vmatpush1.bf16.msra.mxu0 %v285
    %296 = vmatprep.subr.bf16.mxu0 0
    %297 = vmatpush1.bf16.msra.mxu0 %v284
    %298 = vmatprep.subr.bf16.mxu0 0
    %299 = vmatpush1.bf16.msra.mxu0 %v283
    %300 = vmatprep.subr.bf16.mxu0 0
    %301 = vmatpush1.bf16.msra.mxu0 %v282
    %302 = vmatprep.subr.bf16.mxu0 0
    %303 = vmatpush1.bf16.msra.mxu0 %v281
    %304 = vmatprep.subr.bf16.mxu0 0
    %305 = vmatpush1.bf16.msra.mxu0 %v280
    %306 = vmatprep.subr.bf16.mxu0 0
    %307 = vmatpush1.bf16.msra.mxu0 %v279
    %308 = vmatprep.subr.bf16.mxu0 0
    %309 = vmatpush1.bf16.msra.mxu0 %v278
    %310 = vmatprep.subr.bf16.mxu0 0
    %311 = vmatpush2.bf16.msra.mxu0 0
    %312 = vmatprep.subr.bf16.mxu0 0
    %313 = vmatpush2.bf16.msra.mxu0 0
    %314 = vmatprep.subr.bf16.mxu0 0
    %315 = vmatpush2.bf16.msra.mxu0 0
    %316 = vmatprep.subr.bf16.mxu0 0
    %317 = vmatpush2.bf16.msra.mxu0 0
    %318 = vmatprep.subr.bf16.mxu0 0
    %319 = vmatpush2.bf16.msra.mxu0 0
    %320 = vmatprep.subr.bf16.mxu0 0
    %321 = vmatpush2.bf16.msra.mxu0 0
    %322 = vmatprep.subr.bf16.mxu0 0
    %323 = vmatpush2.bf16.msra.mxu0 0
    %324 = vmatprep.subr.bf16.mxu0 0
    %325 = vmatpush2.bf16.msra.mxu0 0
    %326 = vmatprep.mubr.bf16.mxu0 0
    %327 = vmatmul.mubr.bf16.gmra.mxu0 %v222
    %v328 = vpop.f32.mrf.mxu0
    %v329 = vadd.f32 %v244, %v328
    %v330 = vpop.f32.mrf.mxu0
    %v331 = vpop.f32.mrf.mxu0
    %v332 = vpop.f32.mrf.mxu0
    %333 = vdwg.mxu0
    %v334 = vmax.f32 %v329, 0.0
    %v335 = vadd.s32 %v209, 144358622
    %v336 = vshrl.u32 %v335, 16
    %v337 = vxor.u32 %v335, %v336
    %v338 = vmul.u32 %v337, 2246822507
    %v339 = vshrl.u32 %v338, 13
    %v340 = vxor.u32 %v338, %v339
    %v341 = vmul.u32 %v340, 3266489909
    %v342 = vshrl.u32 %v341, 16
    %v343 = vxor.u32 %v341, %v342
    %vm344 = vcmp.ge.u32.totalorder %v343, 2147483648
    %v345 = vmul.f32 %v334, 2.0
    %v346 = vsel %vm344, %v345, 0.0
    %v347 = vpack.c.bf16 %v346, %v346
    %v348 = vld [vmem:[#allocation10] sm:$0xf]
    %v349 = vld [vmem:[#allocation10 + $0x4] sm:$0xf]
    %v350 = vld [vmem:[#allocation10 + $0x8] sm:$0xf]
    %v351 = vld [vmem:[#allocation10 + $0xc] sm:$0xf]
    %v352 = vld [vmem:[#allocation10 + $0x10] sm:$0xf]
    %v353 = vld [vmem:[#allocation10 + $0x14] sm:$0xf]
    %v354 = vld [vmem:[#allocation10 + $0x18] sm:$0xf]
    %v355 = vld [vmem:[#allocation10 + $0x1c] sm:$0xf]
    %v356 = vld [vmem:[#allocation10 + $0x20] sm:$0xf]
    %v357 = vld [vmem:[#allocation10 + $0x24] sm:$0xf]
    %v358 = vld [vmem:[#allocation10 + $0x28] sm:$0xf]
    %v359 = vld [vmem:[#allocation10 + $0x2c] sm:$0xf]
    %v360 = vld [vmem:[#allocation10 + $0x30] sm:$0xf]
    %v361 = vld [vmem:[#allocation10 + $0x34] sm:$0xf]
    %v362 = vld [vmem:[#allocation10 + $0x38] sm:$0xf]
    %v363 = vld [vmem:[#allocation10 + $0x3c] sm:$0xf]
    %v364 = vld [vmem:[%s7] sm:$0x1]
    %v366 = vlaneseq
    %v367 = vshrl.u32 %v366, 7
    %v368 = vsub.s32 0, %v367
    %v369 = vrot.slane %v364, %v368
    %v387 = vunpack.c.l.b16 %v348
    %v388 = vunpack.c.l.b16 %v349
    %v389 = vunpack.c.l.b16 %v350
    %v390 = vunpack.c.l.b16 %v351
    %v391 = vunpack.c.l.b16 %v352
    %v392 = vunpack.c.l.b16 %v353
    %v393 = vunpack.c.l.b16 %v354
    %v394 = vunpack.c.l.b16 %v355
    %v395 = vunpack.c.l.b16 %v356
    %v396 = vunpack.c.l.b16 %v357
    %v397 = vunpack.c.l.b16 %v358
    %v398 = vunpack.c.l.b16 %v359
    %v399 = vunpack.c.l.b16 %v360
    %v400 = vunpack.c.l.b16 %v361
    %v401 = vunpack.c.l.b16 %v362
    %v402 = vunpack.c.l.b16 %v363
    %v403 = vpack.c.b16 %v388, %v387
    %v404 = vpack.c.b16 %v390, %v389
    %v405 = vpack.c.b16 %v392, %v391
    %v406 = vpack.c.b16 %v394, %v393
    %v407 = vpack.c.b16 %v396, %v395
    %v408 = vpack.c.b16 %v398, %v397
    %v409 = vpack.c.b16 %v400, %v399
    %v410 = vpack.c.b16 %v402, %v401
    %419 = vmatprep.subr.bf16.mxu0 0
    %420 = vmatpush1.bf16.msra.mxu0 %v410
    %421 = vmatprep.subr.bf16.mxu0 0
    %422 = vmatpush1.bf16.msra.mxu0 %v409
    %423 = vmatprep.subr.bf16.mxu0 0
    %424 = vmatpush1.bf16.msra.mxu0 %v408
    %425 = vmatprep.subr.bf16.mxu0 0
    %426 = vmatpush1.bf16.msra.mxu0 %v407
    %427 = vmatprep.subr.bf16.mxu0 0
    %428 = vmatpush1.bf16.msra.mxu0 %v406
    %429 = vmatprep.subr.bf16.mxu0 0
    %430 = vmatpush1.bf16.msra.mxu0 %v405
    %431 = vmatprep.subr.bf16.mxu0 0
    %432 = vmatpush1.bf16.msra.mxu0 %v404
    %433 = vmatprep.subr.bf16.mxu0 0
    %434 = vmatpush1.bf16.msra.mxu0 %v403
    %435 = vmatprep.subr.bf16.mxu0 0
    %436 = vmatpush2.bf16.msra.mxu0 0
    %437 = vmatprep.subr.bf16.mxu0 0
    %438 = vmatpush2.bf16.msra.mxu0 0
    %439 = vmatprep.subr.bf16.mxu0 0
    %440 = vmatpush2.bf16.msra.mxu0 0
    %441 = vmatprep.subr.bf16.mxu0 0
    %442 = vmatpush2.bf16.msra.mxu0 0
    %443 = vmatprep.subr.bf16.mxu0 0
    %444 = vmatpush2.bf16.msra.mxu0 0
    %445 = vmatprep.subr.bf16.mxu0 0
    %446 = vmatpush2.bf16.msra.mxu0 0
    %447 = vmatprep.subr.bf16.mxu0 0
    %448 = vmatpush2.bf16.msra.mxu0 0
    %449 = vmatprep.subr.bf16.mxu0 0
    %450 = vmatpush2.bf16.msra.mxu0 0
    %451 = vmatprep.mubr.bf16.mxu0 0
    %452 = vmatmul.mubr.bf16.gmra.mxu0 %v347
    %v453 = vpop.f32.mrf.mxu0
    %v454 = vadd.f32 %v369, %v453
    %v455 = vpop.f32.mrf.mxu0
    %v456 = vpop.f32.mrf.mxu0
    %v457 = vpop.f32.mrf.mxu0
    %458 = vdwg.mxu0
    %459 = vst [vmem:[#allocation12] sm:$0xff] %v454
    // Predicated region
    $region46: #{tpu_custom_call.1} parent=1 // pred_check
      _
    $region47: #{tpu_custom_call.1} parent=1 // pred_check_branch
      %461 = sbr.rel (0) target = $region49
    $region48: #{tpu_custom_call.1} parent=1 // pred_region
      %s463 = ssub.s32 128, 128
      %464 = vsyncadd [#allocation6], %s463
      %s466 = sshll.u32 [#allocation12], 4
      %s467 = int_to_ptr.vmem [resolvable:$true] %s466
      %469 = dma.vmem_to_hbm [thread:$0]  %s467, 128, %s8, [#allocation6]
    $region49: #{tpu_custom_call.1} parent=1 // pred_fallthru
      _
    // Predicated region
    $region50: #{tpu_custom_call.1} parent=1 // pred_check
      _
    $region51: #{tpu_custom_call.1} parent=1 // pred_check_branch
      %471 = sbr.rel (0) target = $region53
    $region52: #{tpu_custom_call.1} parent=1 // pred_region
      %472 = dma.done [#allocation6], 128
    $region53: #{tpu_custom_call.1} parent=1 // pred_fallthru
      _
    %473 = vsyncpa [#allocation5], 1
    %474 = vsyncpa [#allocation8], 1
    %475 = vsyncpa [#allocation11], 1
    %476 = vsyncpa [#allocation6], 1

</llo_original>
